<compile_context>
chip_gen: v7x
topology: tpu7x:2x2x1
jax: 0.10.0
libtpu: 0.0.40
codegen_flags: <defaults>
</compile_context>

<pallas_src>
import functools

import jax
import jax.numpy as jnp
from jax.experimental import pallas as pl
from jax.experimental.pallas import tpu as pltpu


_TARGET_TILE_ELEMS = 1024 * 128   # ~512 KiB f32 per operand tile, double-buffered


def _huber_tile_kernel(x_ref, t_ref, tmean_ref, *rest, delta, smoothing_factor,
                       total_rows, weighted):
    """One row-tile of the weighted Huber loss; emits a raw f32 partial sum."""
    out_ref = rest[-1]

    x = x_ref[...].astype(jnp.float32)            # (TILE, C)
    t = t_ref[...].astype(jnp.float32)            # (TILE, C)
    tm = tmean_ref[...].astype(jnp.float32)       # (1, C), broadcasts over rows

    # target_smoothed = (1 - sf) * target + sf * mean(target, dim=0)
    t_smoothed = (1.0 - smoothing_factor) * t + smoothing_factor * tm

    err = jnp.abs(x - t_smoothed)
    loss = jnp.where(err < delta, 0.5 * err * err, delta * (err - 0.5 * delta))

    if weighted:
        w = rest[0][...].astype(jnp.float32)      # (TILE, 1) or (TILE, C)
        loss = loss * w

    # Mask rows that fall past the end of the array (partial last tile).
    tile_rows = x_ref.shape[0]
    row0 = pl.program_id(0) * tile_rows
    rows = row0 + jax.lax.broadcasted_iota(jnp.int32, loss.shape, 0)
    loss = jnp.where(rows < total_rows, loss, 0.0)

    # Raw partial sum for this tile; the 1/(N*D) scale is applied once outside.
    part = jnp.sum(loss, axis=1, keepdims=True)   # lane reduce     -> (TILE, 1)
    part = jnp.sum(part, axis=0, keepdims=True)   # sublane reduce  -> (1, 1)
    out_ref[...] = jnp.broadcast_to(part[None], out_ref.shape)


def _choose_tile_rows(total_rows, cols, tile_rows):
    if tile_rows is None:
        cap = max(8, (_TARGET_TILE_ELEMS // max(cols, 1)) // 8 * 8)
    else:
        cap = max(8, (int(tile_rows) // 8) * 8)
    # If a single tile covers everything, "block == full dim" is always legal.
    return total_rows if total_rows <= cap else cap


def weighted_huber_loss(inputs, targets, sample_weight=None, delta=1.0,
                        smoothing_factor=0.1, validate=False, tile_rows=None):
    """JAX/Pallas equivalent of WeightedHuberLoss.forward (returns a scalar).

    validate=True reproduces the torch module's raise-on-NaN/Inf behavior but
    requires concrete arrays (not usable under jax.jit).  Default path is
    jittable.
    """
    assert inputs.shape == targets.shape, (
        f"Shape mismatch: {inputs.shape} vs {targets.shape}")
    assert inputs.ndim == 2, "expects (batch, features) like the torch module"

    if validate:
        # TODO(synk): raising on bad values is not expressible inside a TPU
        # kernel / traced function; these host-side checks mirror the module.
        def _any_nan(a):
            return bool(jnp.any(jnp.isnan(a)))

        def _any_inf(a):
            return bool(jnp.any(jnp.isinf(a)))

        in_nan, tg_nan = _any_nan(inputs), _any_nan(targets)
        if in_nan or tg_nan:
            if in_nan and tg_nan:
                raise ValueError("Both the input and target contain NaN values")
            raise ValueError("Inputs contain NaN values" if in_nan
                             else "Targets contain NaN values")
        in_inf, tg_inf = _any_inf(inputs), _any_inf(targets)
        if in_inf or tg_inf:
            if in_inf and tg_inf:
                raise ValueError("Both the input and target contain INF values")
            raise ValueError("Inputs contain INF values" if in_inf
                             else "Targets contain INF values")
        if sample_weight is not None and (_any_nan(sample_weight)
                                          or _any_inf(sample_weight)):
            raise ValueError("Sample weight contains NaN or Inf values")

    n, d = inputs.shape
    weighted = sample_weight is not None

    # Per-feature target mean: tiny XLA reduction, accumulated in f32,
    # passed to the tiled loss kernel as a resident (1, C) block.
    t_mean = jnp.mean(targets, axis=0, keepdims=True, dtype=jnp.float32)  # (1,D)

    # Lane-dense fast path: view (N, D) as (N*D/128, 128) (free row-major
    # reshape) so vregs are fully occupied even for tiny feature dims.
    lane_dense = (0 < d < 128) and (128 % d == 0) and ((n * d) % 128 == 0)

    if lane_dense:
        rep = 128 // d
        total_rows = (n * d) // 128
        x2 = inputs.reshape(total_rows, 128)
        t2 = targets.reshape(total_rows, 128)
        tm2 = jnp.tile(t_mean, (1, rep))                                  # (1,128)
        if weighted:
            w_flat = jnp.repeat(
                jnp.reshape(sample_weight, (-1,)).astype(jnp.float32), d)
            w2 = w_flat.reshape(total_rows, 128)
    else:
        total_rows = n
        x2, t2, tm2 = inputs, targets, t_mean
        if weighted:
            w2 = jnp.reshape(sample_weight, (n, 1)).astype(jnp.float32)

    cols = x2.shape[1]
    tile = _choose_tile_rows(total_rows, cols, tile_rows)
    num_tiles = pl.cdiv(total_rows, tile)

    in_specs = [
        pl.BlockSpec((tile, cols), lambda i: (i, 0)),
        pl.BlockSpec((tile, cols), lambda i: (i, 0)),
        pl.BlockSpec((1, cols), lambda i: (0, 0)),
    ]
    args = [x2, t2, tm2]
    if weighted:
        in_specs.append(pl.BlockSpec((tile, w2.shape[1]), lambda i: (i, 0)))
        args.append(w2)

    kernel = functools.partial(
        _huber_tile_kernel,
        delta=float(delta),
        smoothing_factor=float(smoothing_factor),
        total_rows=total_rows,
        weighted=weighted,
    )

    partials = pl.pallas_call(
        kernel,
        grid=(num_tiles,),
        in_specs=in_specs,
        out_specs=pl.BlockSpec((1, 8, 128), lambda i: (i, 0, 0)),
        out_shape=jax.ShapeDtypeStruct((num_tiles, 8, 128), jnp.float32),
        compiler_params=pltpu.CompilerParams(
            dimension_semantics=("parallel",),
            vmem_limit_bytes=32 * 1024 * 1024,
        ),
    )(*args)

    total = jnp.sum(partials[:, 0, 0])
    return total / float(n * d)


def _reference(inputs, targets, sample_weight, delta=1.0, smoothing_factor=0.1):
    x = inputs.astype(jnp.float32)
    t = targets.astype(jnp.float32)
    t_sm = (1.0 - smoothing_factor) * t + smoothing_factor * jnp.mean(
        t, axis=0, keepdims=True)
    err = jnp.abs(x - t_sm)
    loss = jnp.where(err < delta, 0.5 * err ** 2, delta * (err - 0.5 * delta))
    if sample_weight is not None:
        loss = loss * jnp.reshape(sample_weight, (-1, 1)).astype(jnp.float32)
    return jnp.mean(loss)


if __name__ == "__main__":
    key = jax.random.PRNGKey(0)
    ks = jax.random.split(key, 10)

    # Case 1: generic path (D=2, N*D not 128-aligned), weighted + unweighted, f32.
    N1, D1 = 16, 2
    x1 = jax.random.normal(ks[0], (N1, D1), dtype=jnp.float32) * 2.0
    t1 = jax.random.normal(ks[1], (N1, D1), dtype=jnp.float32)
    w1 = jax.random.uniform(ks[2], (N1,), dtype=jnp.float32) + 0.5

    out1 = weighted_huber_loss(x1, t1, w1, delta=1.0, smoothing_factor=0.1)
    jax.block_until_ready(out1)
    ref1 = _reference(x1, t1, w1)
    assert jnp.allclose(out1, ref1, rtol=1e-5, atol=1e-6), (out1, ref1)

    out1u = weighted_huber_loss(x1, t1, None, delta=1.0, smoothing_factor=0.1)
    jax.block_until_ready(out1u)
    ref1u = _reference(x1, t1, None)
    assert jnp.allclose(out1u, ref1u, rtol=1e-5, atol=1e-6), (out1u, ref1u)

    # Case 2: lane-dense path (N*D % 128 == 0), bf16 inputs, weighted, jitted.
    N2, D2 = 256, 2
    x2 = (jax.random.normal(ks[3], (N2, D2), dtype=jnp.float32)
          ).astype(jnp.bfloat16)
    t2 = (jax.random.normal(ks[4], (N2, D2), dtype=jnp.float32)
          ).astype(jnp.bfloat16)
    w2 = jax.random.uniform(ks[5], (N2,), dtype=jnp.float32) + 0.5
    loss_fn = jax.jit(functools.partial(
        weighted_huber_loss, delta=1.0, smoothing_factor=0.1))
    out2 = loss_fn(x2, t2, w2)
    jax.block_until_ready(out2)
    ref2 = _reference(x2, t2, w2)
    assert jnp.allclose(out2, ref2, rtol=1e-4, atol=1e-5), (out2, ref2)

    # Case 3: generic path, multi-tile grid with partial last-tile masking.
    N3, D3 = 20, 3
    x3 = jax.random.normal(ks[6], (N3, D3), dtype=jnp.float32)
    t3 = jax.random.normal(ks[7], (N3, D3), dtype=jnp.float32)
    w3 = jax.random.uniform(ks[8], (N3,), dtype=jnp.float32) + 0.5
    out3 = weighted_huber_loss(x3, t3, w3, tile_rows=8)
    jax.block_until_ready(out3)
    ref3 = _reference(x3, t3, w3)
    assert jnp.allclose(out3, ref3, rtol=1e-5, atol=1e-6), (out3, ref3)

    out3u = weighted_huber_loss(x3, t3, None, tile_rows=8)
    jax.block_until_ready(out3u)
    ref3u = _reference(x3, t3, None)
    assert jnp.allclose(out3u, ref3u, rtol=1e-5, atol=1e-6), (out3u, ref3u)

    print("KERNEL_OK")
</pallas_src>

<mosaic_0001>
module attributes {stable_mosaic.version = 11 : i64} {
  func.func @_huber_tile_kernel(%arg0: i32, %arg1: memref<16x2xf32, #tpu.memory_space<vmem>>, %arg2: memref<16x2xf32, #tpu.memory_space<vmem>>, %arg3: memref<1x2xf32, #tpu.memory_space<vmem>>, %arg4: memref<16x1xf32, #tpu.memory_space<vmem>>, %arg5: memref<1x8x128xf32, #tpu.memory_space<vmem>>) attributes {dimension_semantics = [#tpu.dimension_semantics<parallel>], iteration_bounds = array<i64: 1>, scalar_prefetch = 0 : i64, scratch_operands = 0 : i64, tpu.core_type = #tpu.core_type<tc>, window_params = [{transform_indices = @transform_0, window_bounds = array<i64: 16, 2>}, {transform_indices = @transform_1, window_bounds = array<i64: 16, 2>}, {pipeline_mode = #tpu.pipeline_mode<synchronous>, transform_indices = @transform_2, window_bounds = array<i64: 1, 2>}, {transform_indices = @transform_3, window_bounds = array<i64: 16, 1>}, {transform_indices = @transform_4, window_bounds = array<i64: 1, 8, 128>}]} {
    %c0 = arith.constant 0 : index
    %c0_0 = arith.constant 0 : index
    %0 = vector.load %arg1[%c0, %c0_0] : memref<16x2xf32, #tpu.memory_space<vmem>>, vector<16x2xf32>
    %c0_1 = arith.constant 0 : index
    %c0_2 = arith.constant 0 : index
    %1 = vector.load %arg2[%c0_1, %c0_2] : memref<16x2xf32, #tpu.memory_space<vmem>>, vector<16x2xf32>
    %c0_3 = arith.constant 0 : index
    %c0_4 = arith.constant 0 : index
    %2 = vector.load %arg3[%c0_3, %c0_4] : memref<1x2xf32, #tpu.memory_space<vmem>>, vector<1x2xf32>
    %cst = arith.constant 0.899999976 : f32
    %3 = vector.broadcast %cst : f32 to vector<16x2xf32>
    %4 = arith.mulf %3, %1 : vector<16x2xf32>
    %cst_5 = arith.constant 1.000000e-01 : f32
    %5 = vector.broadcast %cst_5 : f32 to vector<1x2xf32>
    %6 = arith.mulf %5, %2 : vector<1x2xf32>
    %7 = vector.broadcast %6 : vector<1x2xf32> to vector<16x2xf32>
    %8 = arith.addf %4, %7 : vector<16x2xf32>
    %9 = arith.subf %0, %8 : vector<16x2xf32>
    %10 = math.absf %9 : vector<16x2xf32>
    %cst_6 = arith.constant 1.000000e+00 : f32
    %11 = vector.broadcast %cst_6 : f32 to vector<16x2xf32>
    %12 = arith.cmpf olt, %10, %11 : vector<16x2xf32>
    %cst_7 = arith.constant 5.000000e-01 : f32
    %13 = vector.broadcast %cst_7 : f32 to vector<16x2xf32>
    %14 = arith.mulf %13, %10 : vector<16x2xf32>
    %15 = arith.mulf %14, %10 : vector<16x2xf32>
    %cst_8 = arith.constant 5.000000e-01 : f32
    %16 = vector.broadcast %cst_8 : f32 to vector<16x2xf32>
    %17 = arith.subf %10, %16 : vector<16x2xf32>
    %cst_9 = arith.constant 1.000000e+00 : f32
    %18 = vector.broadcast %cst_9 : f32 to vector<16x2xf32>
    %19 = arith.mulf %18, %17 : vector<16x2xf32>
    %20 = arith.select %12, %15, %19 : vector<16x2xi1>, vector<16x2xf32>
    %c0_10 = arith.constant 0 : index
    %c0_11 = arith.constant 0 : index
    %21 = vector.load %arg4[%c0_10, %c0_11] : memref<16x1xf32, #tpu.memory_space<vmem>>, vector<16x1xf32>
    %22 = vector.broadcast %21 : vector<16x1xf32> to vector<16x2xf32>
    %23 = arith.mulf %20, %22 : vector<16x2xf32>
    %c16_i32 = arith.constant 16 : i32
    %24 = arith.muli %arg0, %c16_i32 : i32
    %25 = tpu.iota {dimensions = array<i32: 0>} : vector<16x2xi32>
    %26 = vector.broadcast %24 : i32 to vector<16x2xi32>
    %27 = arith.addi %26, %25 : vector<16x2xi32>
    %c16_i32_12 = arith.constant 16 : i32
    %28 = vector.broadcast %c16_i32_12 : i32 to vector<16x2xi32>
    %29 = arith.cmpi slt, %27, %28 : vector<16x2xi32>
    %cst_13 = arith.constant 0.000000e+00 : f32
    %30 = vector.broadcast %cst_13 : f32 to vector<16x2xf32>
    %31 = arith.select %29, %23, %30 : vector<16x2xi1>, vector<16x2xf32>
    %cst_14 = arith.constant dense<0.000000e+00> : vector<16xf32>
    %32 = vector.multi_reduction <add>, %31, %cst_14 [1] : vector<16x2xf32> to vector<16xf32>
    %33 = vector.shape_cast %32 : vector<16xf32> to vector<16x1xf32>
    %cst_15 = arith.constant dense<0.000000e+00> : vector<1xf32>
    %34 = vector.multi_reduction <add>, %33, %cst_15 [0] : vector<16x1xf32> to vector<1xf32>
    %35 = vector.shape_cast %34 : vector<1xf32> to vector<1x1xf32>
    %36 = vector.shape_cast %35 : vector<1x1xf32> to vector<1x1x1xf32>
    %37 = vector.shape_cast %36 : vector<1x1x1xf32> to vector<1x1x1xf32>
    %38 = vector.broadcast %37 : vector<1x1x1xf32> to vector<1x8x128xf32>
    %c0_16 = arith.constant 0 : index
    %c0_17 = arith.constant 0 : index
    %c0_18 = arith.constant 0 : index
    %39 = vector.load %arg5[%c0_16, %c0_17, %c0_18] : memref<1x8x128xf32, #tpu.memory_space<vmem>>, vector<1x8x128xf32>
    tpu.vector_store %arg5[%c0_16, %c0_17, %c0_18], %38 {strides = array<i32>} : memref<1x8x128xf32, #tpu.memory_space<vmem>>, vector<1x8x128xf32>,
    return
  }
  func.func @transform_0(%arg0: i32) -> (i32, i32) {
    %c0_i32 = arith.constant 0 : i32
    %c0_i32_0 = arith.constant 0 : i32
    return %arg0, %c0_i32 : i32, i32
  }
  func.func @transform_1(%arg0: i32) -> (i32, i32) {
    %c0_i32 = arith.constant 0 : i32
    %c0_i32_0 = arith.constant 0 : i32
    return %arg0, %c0_i32 : i32, i32
  }
  func.func @transform_2(%arg0: i32) -> (i32, i32) {
    %c0_i32 = arith.constant 0 : i32
    %c0_i32_0 = arith.constant 0 : i32
    %c0_i32_1 = arith.constant 0 : i32
    return %c0_i32, %c0_i32_0 : i32, i32
  }
  func.func @transform_3(%arg0: i32) -> (i32, i32) {
    %c0_i32 = arith.constant 0 : i32
    %c0_i32_0 = arith.constant 0 : i32
    return %arg0, %c0_i32 : i32, i32
  }
  func.func @transform_4(%arg0: i32) -> (i32, i32, i32) {
    %c0_i32 = arith.constant 0 : i32
    %c0_i32_0 = arith.constant 0 : i32
    %c0_i32_1 = arith.constant 0 : i32
    return %arg0, %c0_i32, %c0_i32_0 : i32, i32, i32
  }
}

</mosaic_0001>

<llo_original>
// kernel: tpu_custom_call.1
$region0: #{tpu_custom_call.1}
  #allocation0 [shape = 'u32[]', space=smem, size = 0x4, offset = 0x4, fixed_abs, tag = 'smem constant byte address 0x4 - core index']
  #allocation1 [shape = 'u32[144,128]{1,0:T(1,128)}', space=vmem, size = 0x12000, scoped, tag = 'internal scratch']
  %s0 = inlined_call_operand.vmem [shape: f32[16,2], index: 0, kind: input, shape index: {}]
  %s1 = inlined_call_operand.vmem [shape: f32[16,2], index: 1, kind: input, shape index: {}]
  %s2 = inlined_call_operand.vmem [shape: f32[1,2], index: 2, kind: input, shape index: {}]
  %s3 = inlined_call_operand.vmem [shape: f32[16,1], index: 3, kind: input, shape index: {}]
  %s4 = inlined_call_operand.hbm [shape: f32[1,8,128], index: 4, kind: output, shape index: {}]
  %s5 = sld [smem:[#allocation0]]
  $region26: #{tpu_custom_call.1} parent=0
    _
  %s7 = ssub.s32 1, %s5
  %s8 = scalar_select 0, %s7, %s5
  $region1: #{tpu_custom_call.1} parent=0
    #allocation2 [shape = 'u8[4096]{0}', space=vmem, size = 0x1000, scoped, tag = 'output window, operand 0, single buffered']
    #allocation3 [shape = 's32[1]{0}', space=sflag, size = 0x4, scoped, tag = 'scoped memory for tpu_custom_call.1']
    %9 = vsyncpa [#allocation3], 0
    // Predicated region
    $region2: #{tpu_custom_call.1} parent=1 // pred_check
      _
    $region3: #{tpu_custom_call.1} parent=1 // pred_check_branch
      %11 = sbr.rel (0) target = $region5
    $region4: #{tpu_custom_call.1} parent=1 // pred_region
      _
    $region5: #{tpu_custom_call.1} parent=1 // pred_fallthru
      _
    // Predicated region
    $region6: #{tpu_custom_call.1} parent=1 // pred_check
      _
    $region7: #{tpu_custom_call.1} parent=1 // pred_check_branch
      %13 = sbr.rel (0) target = $region9
    $region8: #{tpu_custom_call.1} parent=1 // pred_region
      _
    $region9: #{tpu_custom_call.1} parent=1 // pred_fallthru
      _
    // Predicated region
    $region10: #{tpu_custom_call.1} parent=1 // pred_check
      _
    $region11: #{tpu_custom_call.1} parent=1 // pred_check_branch
      %15 = sbr.rel (0) target = $region13
    $region12: #{tpu_custom_call.1} parent=1 // pred_region
      _
    $region13: #{tpu_custom_call.1} parent=1 // pred_fallthru
      _
    // Predicated region
    $region14: #{tpu_custom_call.1} parent=1 // pred_check
      _
    $region15: #{tpu_custom_call.1} parent=1 // pred_check_branch
      %17 = sbr.rel (0) target = $region17
    $region16: #{tpu_custom_call.1} parent=1 // pred_region
      _
    $region17: #{tpu_custom_call.1} parent=1 // pred_fallthru
      _
    %v18 = vld [vmem:[%s0] sm:$0xff]
    %v19 = vld [vmem:[%s0 + $0x8] sm:$0xff]
    %v20 = vld [vmem:[%s1] sm:$0xff]
    %v21 = vld [vmem:[%s1 + $0x8] sm:$0xff]
    %v22 = vld [vmem:[%s2] sm:$0x1]
    %v23 = vmul.f32 %v20, 0.9
    %v24 = vmul.f32 %v21, 0.9
    %v25 = vmul.f32 %v22, 0.1
    %v27 = vlaneseq
    %v28 = vshrl.u32 %v27, 7
    %v29 = vsub.s32 0, %v28
    %v30 = vrot.slane %v25, %v29
    %v32 = vadd.f32 %v23, %v30
    %v33 = vadd.f32 %v24, %v30
    %v34 = vsub.f32 %v18, %v32
    %v35 = vsub.f32 %v19, %v33
    %v36 = vand.u32 2147483647, %v34
    %v37 = vand.u32 2147483647, %v35
    %vm38 = vcmp.lt.f32.partialorder %v36, 1.0
    %vm39 = vcmp.lt.f32.partialorder %v37, 1.0
    %v40 = vmul.f32 %v36, 0.5
    %v41 = vmul.f32 %v37, 0.5
    %v42 = vmul.f32 %v40, %v36
    %v43 = vmul.f32 %v41, %v37
    %v44 = vsub.f32 %v36, 0.5
    %v45 = vsub.f32 %v37, 0.5
    %v46 = vsel %vm38, %v42, %v44
    %v47 = vsel %vm39, %v43, %v45
    %v48 = vld [vmem:[%s3] sm:$0xff]
    %v49 = vld [vmem:[%s3 + $0x8] sm:$0xff]
    %51 = vset.pattern.permute.xlu0 0
    %52 = vperm.xlu0 %51, %v48
    %v53 = vpop.permute.xlu0 %52
    %56 = vset.pattern.permute.xlu0 0
    %57 = vperm.xlu0 %56, %v49
    %v58 = vpop.permute.xlu0 %57
    %v60 = vmul.f32 %v46, %v53
    %v61 = vmul.f32 %v47, %v58
    %s62 = smul.u32 0, 16
    %v63 = vlaneseq
    %v64 = vshrl.u32 %v63, 7
    %v65 = vadd.s32 %v64, 8
    %v66 = vstv %s62
    %v67 = vadd.s32 %v66, %v64
    %v68 = vadd.s32 %v66, %v65
    %vm69 = vcmp.lt.s32.totalorder %v67, 16
    %vm70 = vcmp.lt.s32.totalorder %v68, 16
    %v71 = vsel %vm69, %v60, 0.0
    %v72 = vsel %vm70, %v61, 0.0
    %vm73 = vcmask 15360
    %v74 = vsel %vm73, %v71, 0.0
    %75 = vadd.xlane.f32.xlu0 %v74
    %v76 = vpop.xlane.xlu0 %75
    %v77 = vsel %vm73, %v72, 0.0
    %78 = vadd.xlane.f32.xlu0 %v77
    %v79 = vpop.xlane.xlu0 %78
    %v80 = vadd.f32 %v76, %v79
    %v81 = vrot.slane %v80, 4
    %v82 = vadd.f32 %v80, %v81
    %v83 = vrot.slane %v82, 2
    %v84 = vadd.f32 %v82, %v83
    %v85 = vrot.slane %v84, 1
    %v86 = vadd.f32 %v84, %v85
    %87 = vst [vmem:[#allocation2] sm:$0xff] %v86
    // Predicated region
    $region18: #{tpu_custom_call.1} parent=1 // pred_check
      _
    $region19: #{tpu_custom_call.1} parent=1 // pred_check_branch
      %89 = sbr.rel (0) target = $region21
    $region20: #{tpu_custom_call.1} parent=1 // pred_region
      %s91 = ssub.s32 128, 128
      %92 = vsyncadd [#allocation3], %s91
      %s94 = sshll.u32 [#allocation2], 4
      %s95 = int_to_ptr.vmem [resolvable:$true] %s94
      %97 = dma.vmem_to_hbm [thread:$0]  %s95, 128, %s4, [#allocation3]
    $region21: #{tpu_custom_call.1} parent=1 // pred_fallthru
      _
    // Predicated region
    $region22: #{tpu_custom_call.1} parent=1 // pred_check
      _
    $region23: #{tpu_custom_call.1} parent=1 // pred_check_branch
      %99 = sbr.rel (0) target = $region25
    $region24: #{tpu_custom_call.1} parent=1 // pred_region
      %100 = dma.done [#allocation3], 128
    $region25: #{tpu_custom_call.1} parent=1 // pred_fallthru
      _
    %101 = vsyncpa [#allocation3], 1

</llo_original>
